<compile_context>
chip_gen: v7x
topology: tpu7x:2x2x1
jax: 0.10.0
libtpu: 0.0.40
codegen_flags: <defaults>
</compile_context>

<pallas_src>
import functools
import math

import jax
import jax.numpy as jnp
from jax.experimental import pallas as pl
from jax.experimental.pallas import tpu as pltpu


_TARGET_BLOCK_BYTES = 4 * 1024 * 1024   # per x-block DMA payload target (2-8 MiB band)
_MAX_BLOCK_BYTES = 8 * 1024 * 1024      # hard per x-block cap (keeps v7x 64 MiB VMEM safe)


def _build_pe(dim: int, max_len: int = 5000) -> jnp.ndarray:
    """Deterministic buffer construction, identical to the PyTorch __init__."""
    assert dim % 2 == 0, "PositionalEncoding requires an even `dim`"
    position = jnp.arange(0, max_len, dtype=jnp.float32)[:, None]            # (max_len, 1)
    div_term = jnp.exp(
        jnp.arange(0, dim, 2, dtype=jnp.float32) * (-math.log(10000.0) / dim)
    )                                                                         # (dim//2,)
    pe = jnp.zeros((max_len, dim), dtype=jnp.float32)
    pe = pe.at[:, 0::2].set(jnp.sin(position * div_term))
    pe = pe.at[:, 1::2].set(jnp.cos(position * div_term))
    return pe                                                                 # (max_len, dim)


def _vmem_capacity_bytes() -> int:
    """Per-generation VMEM capacity; conservative fallback = v7x per-TC (64 MiB)."""
    try:
        cap = getattr(pltpu.get_tpu_info(), "vmem_capacity_bytes", None)
        if cap:
            return int(cap)
    except Exception:
        pass
    return 64 * 1024 * 1024


def _round_up(x: int, m: int) -> int:
    return ((x + m - 1) // m) * m


def _sublane_align(dtype) -> int:
    """Packed-layout tile height: 8 for 32-bit, 16 for 16-bit, 32 for 8-bit."""
    bits = jnp.dtype(dtype).itemsize * 8
    return {32: 8, 16: 16, 8: 32}.get(bits, 8)


def _add_pe_kernel(x_ref, pe_ref, o_ref, *, replicas: int):
    # x_ref / o_ref : (ts, replicas*D) tile, fused (batch-group, dim) lane axis
    # pe_ref        : (ts, D) tile of the positional-encoding buffer (x.dtype)
    pe = pe_ref[...]
    if replicas > 1:
        # lane-axis replication; column j = b*D + d gets pe[:, d].
        # HBM-bound kernel -> this VPU/XLU work hides under DMA slack.
        pe = jnp.tile(pe, (1, replicas))
    o_ref[...] = (x_ref[...] + pe).astype(o_ref.dtype)


def positional_encoding_forward(x: jnp.ndarray, pe: jnp.ndarray, *,
                                seq_tile: int | None = None,
                                max_block_bytes: int = _MAX_BLOCK_BYTES,
                                donate_x: bool = False) -> jnp.ndarray:
    """x: (S, B, D); pe: (max_len, D).  Returns x + pe[:S] broadcast over batch."""
    S, B, D = x.shape
    max_len, pe_dim = pe.shape
    assert pe_dim == D, "pe dim mismatch"
    assert S <= max_len, "sequence longer than positional-encoding buffer"

    itemsize = jnp.dtype(x.dtype).itemsize
    align = _sublane_align(x.dtype)

    x2 = x.reshape(S, B * D)  # contiguous -> free view; lane-dense last dim

    # --- lane-axis (batch-group) blocking ------------------------------------
    # Only engaged when even a minimal (align-row) x block exceeds the budget.
    # Block width nb*D must be a multiple of 128 lanes (or equal the full B*D).
    nb = B
    if B > 1 and align * B * D * itemsize > max_block_bytes:
        nb_unit = 128 // math.gcd(D, 128)  # smallest nb with nb*D % 128 == 0
        cand = (max_block_bytes // (align * D * itemsize)) // nb_unit * nb_unit
        cand = max(nb_unit, cand)
        if cand < B:
            nb = cand
    cols = nb * D
    num_b_tiles = pl.cdiv(B * D, cols)

    # --- sequence-tile sizing: fixed ~4 MiB block, >=4 grid steps when possible
    if seq_tile is not None:
        ts = int(seq_tile)
    else:
        ts = max(align, (_TARGET_BLOCK_BYTES // (cols * itemsize)) // align * align)
        if S >= 4 * align:
            # keep >= 4 roughly equal steps -> balanced across v7x's 2 TCs,
            # negligible per-step overhead (~0.35 us) at these block sizes
            ts = min(ts, _round_up(pl.cdiv(S, 4), align))
    if ts >= S:
        ts = S  # single block equal to the full sequence extent: always valid
    num_s_tiles = pl.cdiv(S, ts)

    # pe streamed in x's dtype (halves pe read traffic for bf16 activations);
    # slice to S rows if the last grid step would otherwise read past max_len.
    # TODO(synk): PyTorch promotes fp16/bf16 x + f32 pe to f32; here the output
    # stays in x.dtype (document/match intentionally).
    if pe.dtype != x.dtype or num_s_tiles * ts > max_len:
        pe_in = pe[:S].astype(x.dtype)
    else:
        pe_in = pe
    pe_itemsize = jnp.dtype(pe_in.dtype).itemsize

    grid = (num_s_tiles, num_b_tiles)

    # VMEM actually used: double-buffered x-in + out blocks, double-buffered pe.
    block_bytes = 4 * ts * cols * itemsize + 2 * ts * D * pe_itemsize
    vmem_limit = int(min(_vmem_capacity_bytes() * 3 // 4,
                         max(4 * 1024 * 1024,
                             block_bytes + block_bytes // 4 + (1 << 20))))

    cost = pl.CostEstimate(
        flops=S * B * D,
        transcendentals=0,
        bytes_accessed=2 * S * B * D * itemsize + S * D * pe_itemsize,
    )

    out2 = pl.pallas_call(
        functools.partial(_add_pe_kernel, replicas=nb),
        out_shape=jax.ShapeDtypeStruct((S, B * D), x.dtype),
        grid_spec=pltpu.PrefetchScalarGridSpec(
            num_scalar_prefetch=0,
            grid=grid,
            in_specs=[
                pl.BlockSpec((ts, cols), lambda i, j: (i, j)),
                pl.BlockSpec((ts, D), lambda i, j: (i, 0)),
            ],
            out_specs=pl.BlockSpec((ts, cols), lambda i, j: (i, j)),
        ),
        compiler_params=pltpu.CompilerParams(
            dimension_semantics=("parallel", "parallel"),
            vmem_limit_bytes=vmem_limit,
        ),
        cost_estimate=cost,
        input_output_aliases={0: 0} if donate_x else {},
    )(x2, pe_in)

    return out2.reshape(S, B, D)


if __name__ == "__main__":
    # small shapes: seq=8, batch=2, dim=32
    S, B, D = 8, 2, 32
    key = jax.random.PRNGKey(0)
    x = jax.random.normal(key, (S, B, D), dtype=jnp.float32)
    pe = _build_pe(D, max_len=5000)

    out = jax.block_until_ready(positional_encoding_forward(x, pe))
    ref = x + pe[:S][:, None, :]
    assert out.shape == (S, B, D)
    assert jnp.allclose(out, ref, atol=1e-6), "mismatch vs reference"

    # multi-step ragged sequence grid + batch>1 lane replication
    S2, B2, D2 = 20, 3, 64
    x_b = jax.random.normal(jax.random.PRNGKey(1), (S2, B2, D2), dtype=jnp.float32)
    pe_b = _build_pe(D2, max_len=5000)
    out_b = jax.block_until_ready(positional_encoding_forward(x_b, pe_b, seq_tile=16))
    ref_b = x_b + pe_b[:S2][:, None, :]
    assert jnp.allclose(out_b, ref_b, atol=1e-6), "mismatch vs reference (ragged)"

    # lane-axis (batch-group) blocking path: forced small block budget -> 2-D grid
    S3, B3, D3 = 32, 4, 128
    x_c = jax.random.normal(jax.random.PRNGKey(2), (S3, B3, D3), dtype=jnp.float32)
    pe_c = _build_pe(D3, max_len=5000)
    out_c = jax.block_until_ready(
        positional_encoding_forward(x_c, pe_c, max_block_bytes=8 * 1024))
    ref_c = x_c + pe_c[:S3][:, None, :]
    assert jnp.allclose(out_c, ref_c, atol=1e-6), "mismatch vs reference (lane-blocked)"

    # bf16 activations: dtype-aware sublane alignment + pe streamed in bf16
    x_h = x_c.astype(jnp.bfloat16)
    out_h = jax.block_until_ready(positional_encoding_forward(x_h, pe_c))
    ref_h = (x_h.astype(jnp.float32)
             + pe_c[:S3][:, None, :].astype(jnp.bfloat16).astype(jnp.float32))
    assert jnp.allclose(out_h.astype(jnp.float32), ref_h, atol=6e-2), \
        "mismatch vs reference (bf16)"

    print("KERNEL_OK")
</pallas_src>

<mosaic_0001>
module attributes {stable_mosaic.version = 11 : i64} {
  func.func @_add_pe_kernel(%arg0: i32, %arg1: i32, %arg2: memref<8x64xf32, #tpu.memory_space<vmem>>, %arg3: memref<8x32xf32, #tpu.memory_space<vmem>>, %arg4: memref<8x64xf32, #tpu.memory_space<vmem>>) attributes {dimension_semantics = [#tpu.dimension_semantics<parallel>, #tpu.dimension_semantics<parallel>], iteration_bounds = array<i64: 1, 1>, scalar_prefetch = 0 : i64, scratch_operands = 0 : i64, tpu.core_type = #tpu.core_type<tc>, window_params = [{transform_indices = @transform_0, window_bounds = array<i64: 8, 64>}, {transform_indices = @transform_1, window_bounds = array<i64: 8, 32>}, {transform_indices = @transform_2, window_bounds = array<i64: 8, 64>}]} {
    %c0 = arith.constant 0 : index
    %c0_0 = arith.constant 0 : index
    %0 = vector.load %arg3[%c0, %c0_0] : memref<8x32xf32, #tpu.memory_space<vmem>>, vector<8x32xf32>
    %1 = tpu.concatenate %0, %0 in 1 : vector<8x32xf32>, vector<8x32xf32> -> vector<8x64xf32>
    %c0_1 = arith.constant 0 : index
    %c0_2 = arith.constant 0 : index
    %2 = vector.load %arg2[%c0_1, %c0_2] : memref<8x64xf32, #tpu.memory_space<vmem>>, vector<8x64xf32>
    %3 = arith.addf %2, %1 : vector<8x64xf32>
    %c0_3 = arith.constant 0 : index
    %c0_4 = arith.constant 0 : index
    %4 = vector.load %arg4[%c0_3, %c0_4] : memref<8x64xf32, #tpu.memory_space<vmem>>, vector<8x64xf32>
    tpu.vector_store %arg4[%c0_3, %c0_4], %3 {strides = array<i32>} : memref<8x64xf32, #tpu.memory_space<vmem>>, vector<8x64xf32>,
    return
  }
  func.func @transform_0(%arg0: i32, %arg1: i32) -> (i32, i32) {
    %c0_i32 = arith.constant 0 : i32
    return %arg0, %arg1 : i32, i32
  }
  func.func @transform_1(%arg0: i32, %arg1: i32) -> (i32, i32) {
    %c0_i32 = arith.constant 0 : i32
    %c0_i32_0 = arith.constant 0 : i32
    return %arg0, %c0_i32 : i32, i32
  }
  func.func @transform_2(%arg0: i32, %arg1: i32) -> (i32, i32) {
    %c0_i32 = arith.constant 0 : i32
    return %arg0, %arg1 : i32, i32
  }
}

</mosaic_0001>

<llo_original>
// kernel: tpu_custom_call.1
$region0: #{tpu_custom_call.1}
  #allocation0 [shape = 'u32[]', space=smem, size = 0x4, offset = 0x4, fixed_abs, tag = 'smem constant byte address 0x4 - core index']
  #allocation1 [shape = 'u32[144,128]{1,0:T(1,128)}', space=vmem, size = 0x12000, scoped, tag = 'internal scratch']
  %s0 = inlined_call_operand.vmem [shape: f32[8,64], index: 0, kind: input, shape index: {}]
  %s1 = inlined_call_operand.vmem [shape: f32[5000,32], index: 1, kind: input, shape index: {}]
  %s2 = inlined_call_operand.hbm [shape: f32[8,64], index: 2, kind: output, shape index: {}]
  %s3 = sld [smem:[#allocation0]]
  $region18: #{tpu_custom_call.1} parent=0
    _
  %s5 = ssub.s32 1, %s3
  %s6 = scalar_select 0, %s5, %s3
  $region1: #{tpu_custom_call.1} parent=0
    #allocation2 [shape = 'u8[4096]{0}', space=vmem, size = 0x1000, scoped, tag = 'output window, operand 0, single buffered']
    #allocation3 [shape = 's32[1]{0}', space=sflag, size = 0x4, scoped, tag = 'scoped memory for tpu_custom_call.1']
    %7 = vsyncpa [#allocation3], 0
    // Predicated region
    $region2: #{tpu_custom_call.1} parent=1 // pred_check
      _
    $region3: #{tpu_custom_call.1} parent=1 // pred_check_branch
      %9 = sbr.rel (0) target = $region5
    $region4: #{tpu_custom_call.1} parent=1 // pred_region
      _
    $region5: #{tpu_custom_call.1} parent=1 // pred_fallthru
      _
    // Predicated region
    $region6: #{tpu_custom_call.1} parent=1 // pred_check
      _
    $region7: #{tpu_custom_call.1} parent=1 // pred_check_branch
      %11 = sbr.rel (0) target = $region9
    $region8: #{tpu_custom_call.1} parent=1 // pred_region
      _
    $region9: #{tpu_custom_call.1} parent=1 // pred_fallthru
      _
    %v12 = vld [vmem:[%s1] sm:$0xff]
    %14 = vrot.lane.b32.xlu0 %v12, 32
    %v15 = vpop.permute.xlu0 %14
    %vm17 = vcmask 261120
    %v18 = vsel %vm17, %v12, %v15
    %v19 = vld [vmem:[%s0] sm:$0xff]
    %v20 = vadd.f32 %v19, %v18
    %vm21 = vcmask 523264
    %22 = vst.msk [vmem:[#allocation2] sm:$0xff] %vm21, %v20
    // Predicated region
    $region10: #{tpu_custom_call.1} parent=1 // pred_check
      _
    $region11: #{tpu_custom_call.1} parent=1 // pred_check_branch
      %24 = sbr.rel (0) target = $region13
    $region12: #{tpu_custom_call.1} parent=1 // pred_region
      %s26 = ssub.s32 128, 128
      %27 = vsyncadd [#allocation3], %s26
      %s29 = sshll.u32 [#allocation2], 4
      %s30 = int_to_ptr.vmem [resolvable:$true] %s29
      %32 = dma.vmem_to_hbm [thread:$0]  %s30, 128, %s2, [#allocation3]
    $region13: #{tpu_custom_call.1} parent=1 // pred_fallthru
      _
    // Predicated region
    $region14: #{tpu_custom_call.1} parent=1 // pred_check
      _
    $region15: #{tpu_custom_call.1} parent=1 // pred_check_branch
      %34 = sbr.rel (0) target = $region17
    $region16: #{tpu_custom_call.1} parent=1 // pred_region
      %35 = dma.done [#allocation3], 128
    $region17: #{tpu_custom_call.1} parent=1 // pred_fallthru
      _
    %36 = vsyncpa [#allocation3], 1

</llo_original>
